<compile_context>
chip_gen: v5e
topology: v5e:2x2
jax: 0.10.0
libtpu: 0.0.40
codegen_flags: <defaults>
</compile_context>

<pallas_src>
import functools

import jax
import jax.numpy as jnp
from jax import lax
from jax.experimental import pallas as pl
from jax.experimental.pallas import tpu as pltpu


def _attention_kernel(h_ref, wq_ref, wk_ref, wv_ref, wo_ref,
                      bq_ref, bk_ref, bv_ref, bo_ref, o_ref,
                      *, num_heads, head_dim, scaling):
    """One batch-tile grid step.

    Shapes (Bt = batch tile, T = num_patches, D = d_model, hd = head_dim):
      h_ref            : (Bt, T, D)   hidden states
      wq/wk/wv/wo_ref  : (D, D)       input-major weights (torch W transposed)
      bq/bk/bv/bo_ref  : (1, D)
      o_ref            : (Bt, T, D)
    """
    bt, t, d = h_ref.shape

    x = h_ref[...].reshape(bt * t, d)                              # (Bt*T, D)

    # Full-D QKV projections, one fat MXU matmul each (f32 accumulation).
    q = jnp.dot(x, wq_ref[...], preferred_element_type=jnp.float32) + bq_ref[...]
    q = q * scaling
    k = jnp.dot(x, wk_ref[...], preferred_element_type=jnp.float32) + bk_ref[...]
    v = jnp.dot(x, wv_ref[...], preferred_element_type=jnp.float32) + bv_ref[...]

    q = q.reshape(bt, t, d)
    k = k.reshape(bt, t, d)
    v = v.reshape(bt, t, d)

    # Per-head scaled dot-product attention, statically unrolled over heads.
    ctx_heads = []
    for h in range(num_heads):
        lo = h * head_dim
        q_h = q[:, :, lo:lo + head_dim]                            # (Bt, T, hd)
        k_h = k[:, :, lo:lo + head_dim]
        v_h = v[:, :, lo:lo + head_dim]

        s = jnp.einsum("bqd,bkd->bqk", q_h, k_h,
                       preferred_element_type=jnp.float32)          # (Bt, T, T)
        s = s - jnp.max(s, axis=-1, keepdims=True)
        p = jnp.exp(s)
        denom = jnp.sum(p, axis=-1, keepdims=True)                   # (Bt, T, 1)
        # TODO(synk): attention_dropout is identity in eval mode; stateful-PRNG
        # masking of `p` would go here for training.
        ctx_h = jnp.einsum("bqk,bkd->bqd", p, v_h,
                           preferred_element_type=jnp.float32)       # (Bt, T, hd)
        # Fold the softmax normalization into the (small) context tensor.
        ctx_h = ctx_h * pl.reciprocal(denom, approx=True)
        ctx_heads.append(ctx_h)

    ctx = jnp.concatenate(ctx_heads, axis=-1).reshape(bt * t, d)     # (Bt*T, D)

    # Single full-rank output projection + bias.
    out = jnp.dot(ctx, wo_ref[...], preferred_element_type=jnp.float32) + bo_ref[...]
    # TODO(synk): attention_out_dropout is identity in eval mode.
    o_ref[...] = out.reshape(bt, t, d).astype(o_ref.dtype)


def _choose_batch_tile(B, T, D, itemsize, budget_bytes=4 << 20):
    """Largest divisor of B whose (Bt, T, D) slab stays under `budget_bytes`."""
    per_elem = max(T * D * itemsize, 1)
    bt = max(1, min(B, budget_bytes // per_elem))
    while B % bt:
        bt -= 1
    return bt


def patchtst_self_attention(hidden_states, wq, bq, wk, bk, wv, bv, wo, bo,
                            *, num_heads, attention_mask=None, batch_tile=None):
    """Forward pass of PatchTSTSelfAttention (inference).

    hidden_states: (B, T, D); wq/wk/wv/wo: (D, D) in torch Linear layout
    (out_features, in_features); bq/bk/bv/bo: (D,).
    """
    if attention_mask is not None:
        # TODO(synk): additive attention mask not wired in (module default is None).
        raise NotImplementedError("attention_mask is not supported")

    B, T, D = hidden_states.shape
    hd = D // num_heads
    if hd * num_heads != D:
        raise ValueError("d_model must be divisible by num_heads")
    scaling = float(hd) ** -0.5

    bt = batch_tile or _choose_batch_tile(B, T, D, hidden_states.dtype.itemsize)
    if B % bt != 0:
        raise ValueError("batch_tile must divide batch size")

    # Input-major weights so every in-kernel matmul is plain rows x cols on MXU.
    wq_t, wk_t, wv_t, wo_t = wq.T, wk.T, wv.T, wo.T
    bq_2d = bq.reshape(1, D)
    bk_2d = bk.reshape(1, D)
    bv_2d = bv.reshape(1, D)
    bo_2d = bo.reshape(1, D)

    # Grid-constant specs: weights/biases DMA'd once for the whole kernel.
    w_spec = pl.BlockSpec((D, D), lambda b: (0, 0))
    b_spec = pl.BlockSpec((1, D), lambda b: (0, 0))
    x_spec = pl.BlockSpec((bt, T, D), lambda b: (b, 0, 0))

    kernel = functools.partial(
        _attention_kernel, num_heads=num_heads, head_dim=hd, scaling=scaling)

    return pl.pallas_call(
        kernel,
        out_shape=jax.ShapeDtypeStruct((B, T, D), hidden_states.dtype),
        grid=(B // bt,),
        in_specs=[
            x_spec,                                 # hidden states
            w_spec, w_spec, w_spec, w_spec,         # wq, wk, wv, wo (transposed)
            b_spec, b_spec, b_spec, b_spec,         # bq, bk, bv, bo
        ],
        out_specs=x_spec,
        compiler_params=pltpu.CompilerParams(
            dimension_semantics=("parallel",),
        ),
    )(hidden_states, wq_t, wk_t, wv_t, wo_t, bq_2d, bk_2d, bv_2d, bo_2d)


def _reference_attention(x, wq, bq, wk, bk, wv, bv, wo, bo, num_heads):
    """Pure-JAX replica of the PyTorch forward (eval mode)."""
    B, T, D = x.shape
    hd = D // num_heads
    scaling = float(hd) ** -0.5
    hp = lax.Precision.HIGHEST

    q = (jnp.einsum("btd,ed->bte", x, wq, precision=hp) + bq) * scaling
    k = jnp.einsum("btd,ed->bte", x, wk, precision=hp) + bk
    v = jnp.einsum("btd,ed->bte", x, wv, precision=hp) + bv

    def split(t):
        return t.reshape(B, T, num_heads, hd).transpose(0, 2, 1, 3)

    qh, kh, vh = split(q), split(k), split(v)
    s = jnp.einsum("bhtd,bhsd->bhts", qh, kh, precision=hp)
    p = jax.nn.softmax(s, axis=-1)
    ctx = jnp.einsum("bhts,bhsd->bhtd", p, vh, precision=hp)
    ctx = ctx.transpose(0, 2, 1, 3).reshape(B, T, D)
    return jnp.einsum("btd,ed->bte", ctx, wo, precision=hp) + bo


if __name__ == "__main__":
    # Small PatchTST-like config: batch=2, num_patches=8, d_model=32, heads=4.
    B, T, D, H = 2, 8, 32, 4

    key = jax.random.PRNGKey(0)
    keys = jax.random.split(key, 9)
    scale = 0.1
    x = jax.random.normal(keys[0], (B, T, D), dtype=jnp.float32)
    wq = jax.random.normal(keys[1], (D, D), dtype=jnp.float32) * scale
    wk = jax.random.normal(keys[2], (D, D), dtype=jnp.float32) * scale
    wv = jax.random.normal(keys[3], (D, D), dtype=jnp.float32) * scale
    wo = jax.random.normal(keys[4], (D, D), dtype=jnp.float32) * scale
    bq = jax.random.normal(keys[5], (D,), dtype=jnp.float32) * scale
    bk = jax.random.normal(keys[6], (D,), dtype=jnp.float32) * scale
    bv = jax.random.normal(keys[7], (D,), dtype=jnp.float32) * scale
    bo = jax.random.normal(keys[8], (D,), dtype=jnp.float32) * scale

    y = patchtst_self_attention(x, wq, bq, wk, bk, wv, bv, wo, bo, num_heads=H)
    y = jax.block_until_ready(y)

    y_ref = _reference_attention(x, wq, bq, wk, bk, wv, bv, wo, bo, H)
    assert y.shape == (B, T, D)
    assert y.dtype == x.dtype
    max_err = float(jnp.max(jnp.abs(y - y_ref)))
    # Tolerance allows for the approx (EUP) reciprocal in the softmax fold.
    assert jnp.allclose(y, y_ref, atol=2e-3, rtol=2e-3), max_err

    print("KERNEL_OK")
</pallas_src>

<mosaic_0001>
module attributes {stable_mosaic.version = 11 : i64} {
  func.func @_attention_kernel(%arg0: i32, %arg1: memref<2x8x32xf32, #tpu.memory_space<vmem>>, %arg2: memref<32x32xf32, #tpu.memory_space<vmem>>, %arg3: memref<32x32xf32, #tpu.memory_space<vmem>>, %arg4: memref<32x32xf32, #tpu.memory_space<vmem>>, %arg5: memref<32x32xf32, #tpu.memory_space<vmem>>, %arg6: memref<1x32xf32, #tpu.memory_space<vmem>>, %arg7: memref<1x32xf32, #tpu.memory_space<vmem>>, %arg8: memref<1x32xf32, #tpu.memory_space<vmem>>, %arg9: memref<1x32xf32, #tpu.memory_space<vmem>>, %arg10: memref<2x8x32xf32, #tpu.memory_space<vmem>>) attributes {dimension_semantics = [#tpu.dimension_semantics<parallel>], iteration_bounds = array<i64: 1>, scalar_prefetch = 0 : i64, scratch_operands = 0 : i64, tpu.core_type = #tpu.core_type<tc>, window_params = [{transform_indices = @transform_0, window_bounds = array<i64: 2, 8, 32>}, {pipeline_mode = #tpu.pipeline_mode<synchronous>, transform_indices = @transform_1, window_bounds = array<i64: 32, 32>}, {pipeline_mode = #tpu.pipeline_mode<synchronous>, transform_indices = @transform_2, window_bounds = array<i64: 32, 32>}, {pipeline_mode = #tpu.pipeline_mode<synchronous>, transform_indices = @transform_3, window_bounds = array<i64: 32, 32>}, {pipeline_mode = #tpu.pipeline_mode<synchronous>, transform_indices = @transform_4, window_bounds = array<i64: 32, 32>}, {pipeline_mode = #tpu.pipeline_mode<synchronous>, transform_indices = @transform_5, window_bounds = array<i64: 1, 32>}, {pipeline_mode = #tpu.pipeline_mode<synchronous>, transform_indices = @transform_6, window_bounds = array<i64: 1, 32>}, {pipeline_mode = #tpu.pipeline_mode<synchronous>, transform_indices = @transform_7, window_bounds = array<i64: 1, 32>}, {pipeline_mode = #tpu.pipeline_mode<synchronous>, transform_indices = @transform_8, window_bounds = array<i64: 1, 32>}, {transform_indices = @transform_9, window_bounds = array<i64: 2, 8, 32>}]} {
    %c0 = arith.constant 0 : index
    %c0_0 = arith.constant 0 : index
    %c0_1 = arith.constant 0 : index
    %0 = vector.load %arg1[%c0, %c0_0, %c0_1] : memref<2x8x32xf32, #tpu.memory_space<vmem>>, vector<2x8x32xf32>
    %1 = vector.shape_cast %0 : vector<2x8x32xf32> to vector<16x32xf32>
    %c0_2 = arith.constant 0 : index
    %c0_3 = arith.constant 0 : index
    %2 = vector.load %arg2[%c0_2, %c0_3] : memref<32x32xf32, #tpu.memory_space<vmem>>, vector<32x32xf32>
    %cst = arith.constant dense<0.000000e+00> : vector<16x32xf32>
    %3 = tpu.matmul %1, %2, %cst {dimension_numbers = #tpu.dot_dimension_numbers<[1], [0], [0], [1], [0, 0, 1, 1], [], []>} : vector<16x32xf32>, vector<32x32xf32>, vector<16x32xf32> -> vector<16x32xf32>
    %c0_4 = arith.constant 0 : index
    %c0_5 = arith.constant 0 : index
    %4 = vector.load %arg6[%c0_4, %c0_5] : memref<1x32xf32, #tpu.memory_space<vmem>>, vector<1x32xf32>
    %5 = vector.broadcast %4 : vector<1x32xf32> to vector<16x32xf32>
    %6 = arith.addf %3, %5 : vector<16x32xf32>
    %cst_6 = arith.constant 0.353553385 : f32
    %7 = vector.broadcast %cst_6 : f32 to vector<16x32xf32>
    %8 = arith.mulf %6, %7 : vector<16x32xf32>
    %c0_7 = arith.constant 0 : index
    %c0_8 = arith.constant 0 : index
    %9 = vector.load %arg3[%c0_7, %c0_8] : memref<32x32xf32, #tpu.memory_space<vmem>>, vector<32x32xf32>
    %cst_9 = arith.constant dense<0.000000e+00> : vector<16x32xf32>
    %10 = tpu.matmul %1, %9, %cst_9 {dimension_numbers = #tpu.dot_dimension_numbers<[1], [0], [0], [1], [0, 0, 1, 1], [], []>} : vector<16x32xf32>, vector<32x32xf32>, vector<16x32xf32> -> vector<16x32xf32>
    %c0_10 = arith.constant 0 : index
    %c0_11 = arith.constant 0 : index
    %11 = vector.load %arg7[%c0_10, %c0_11] : memref<1x32xf32, #tpu.memory_space<vmem>>, vector<1x32xf32>
    %12 = vector.broadcast %11 : vector<1x32xf32> to vector<16x32xf32>
    %13 = arith.addf %10, %12 : vector<16x32xf32>
    %c0_12 = arith.constant 0 : index
    %c0_13 = arith.constant 0 : index
    %14 = vector.load %arg4[%c0_12, %c0_13] : memref<32x32xf32, #tpu.memory_space<vmem>>, vector<32x32xf32>
    %cst_14 = arith.constant dense<0.000000e+00> : vector<16x32xf32>
    %15 = tpu.matmul %1, %14, %cst_14 {dimension_numbers = #tpu.dot_dimension_numbers<[1], [0], [0], [1], [0, 0, 1, 1], [], []>} : vector<16x32xf32>, vector<32x32xf32>, vector<16x32xf32> -> vector<16x32xf32>
    %c0_15 = arith.constant 0 : index
    %c0_16 = arith.constant 0 : index
    %16 = vector.load %arg8[%c0_15, %c0_16] : memref<1x32xf32, #tpu.memory_space<vmem>>, vector<1x32xf32>
    %17 = vector.broadcast %16 : vector<1x32xf32> to vector<16x32xf32>
    %18 = arith.addf %15, %17 : vector<16x32xf32>
    %19 = vector.shape_cast %8 : vector<16x32xf32> to vector<2x8x32xf32>
    %20 = vector.shape_cast %13 : vector<16x32xf32> to vector<2x8x32xf32>
    %21 = vector.shape_cast %18 : vector<16x32xf32> to vector<2x8x32xf32>
    %22 = vector.extract_strided_slice %19 {offsets = [0, 0, 0], sizes = [2, 8, 8], strides = [1, 1, 1]} : vector<2x8x32xf32> to vector<2x8x8xf32>
    %23 = vector.extract_strided_slice %20 {offsets = [0, 0, 0], sizes = [2, 8, 8], strides = [1, 1, 1]} : vector<2x8x32xf32> to vector<2x8x8xf32>
    %24 = vector.extract_strided_slice %21 {offsets = [0, 0, 0], sizes = [2, 8, 8], strides = [1, 1, 1]} : vector<2x8x32xf32> to vector<2x8x8xf32>
    "tpu.trace_start"() <{level = 10 : i32, message = "bqd,bkd->bqk"}> : () -> ()
    %cst_17 = arith.constant dense<0.000000e+00> : vector<2x8x8xf32>
    %25 = tpu.matmul %22, %23, %cst_17 {dimension_numbers = #tpu.dot_dimension_numbers<[2], [2], [1], [1], [0, 0, 0, 1, 1, 1], [0], [0]>} : vector<2x8x8xf32>, vector<2x8x8xf32>, vector<2x8x8xf32> -> vector<2x8x8xf32>
    "tpu.trace_stop"() : () -> ()
    %cst_18 = arith.constant dense<0xFF800000> : vector<2x8xf32>
    %26 = vector.multi_reduction <maximumf>, %25, %cst_18 [2] : vector<2x8x8xf32> to vector<2x8xf32>
    %27 = vector.shape_cast %26 : vector<2x8xf32> to vector<2x8x1xf32>
    %28 = vector.broadcast %27 : vector<2x8x1xf32> to vector<2x8x8xf32>
    %29 = arith.subf %25, %28 : vector<2x8x8xf32>
    %30 = math.exp %29 : vector<2x8x8xf32>
    %cst_19 = arith.constant dense<0.000000e+00> : vector<2x8xf32>
    %31 = vector.multi_reduction <add>, %30, %cst_19 [2] : vector<2x8x8xf32> to vector<2x8xf32>
    %32 = vector.shape_cast %31 : vector<2x8xf32> to vector<2x8x1xf32>
    "tpu.trace_start"() <{level = 10 : i32, message = "bqk,bkd->bqd"}> : () -> ()
    %cst_20 = arith.constant dense<0.000000e+00> : vector<2x8x8xf32>
    %33 = tpu.matmul %30, %24, %cst_20 {dimension_numbers = #tpu.dot_dimension_numbers<[2], [1], [1], [2], [0, 0, 0, 1, 1, 2], [0], [0]>} : vector<2x8x8xf32>, vector<2x8x8xf32>, vector<2x8x8xf32> -> vector<2x8x8xf32>
    "tpu.trace_stop"() : () -> ()
    %34 = tpu.reciprocal %32 {approx = true} : vector<2x8x1xf32> -> vector<2x8x1xf32>
    %35 = vector.broadcast %34 : vector<2x8x1xf32> to vector<2x8x8xf32>
    %36 = arith.mulf %33, %35 : vector<2x8x8xf32>
    %37 = vector.extract_strided_slice %19 {offsets = [0, 0, 8], sizes = [2, 8, 8], strides = [1, 1, 1]} : vector<2x8x32xf32> to vector<2x8x8xf32>
    %38 = vector.extract_strided_slice %20 {offsets = [0, 0, 8], sizes = [2, 8, 8], strides = [1, 1, 1]} : vector<2x8x32xf32> to vector<2x8x8xf32>
    %39 = vector.extract_strided_slice %21 {offsets = [0, 0, 8], sizes = [2, 8, 8], strides = [1, 1, 1]} : vector<2x8x32xf32> to vector<2x8x8xf32>
    "tpu.trace_start"() <{level = 10 : i32, message = "bqd,bkd->bqk"}> : () -> ()
    %cst_21 = arith.constant dense<0.000000e+00> : vector<2x8x8xf32>
    %40 = tpu.matmul %37, %38, %cst_21 {dimension_numbers = #tpu.dot_dimension_numbers<[2], [2], [1], [1], [0, 0, 0, 1, 1, 1], [0], [0]>} : vector<2x8x8xf32>, vector<2x8x8xf32>, vector<2x8x8xf32> -> vector<2x8x8xf32>
    "tpu.trace_stop"() : () -> ()
    %cst_22 = arith.constant dense<0xFF800000> : vector<2x8xf32>
    %41 = vector.multi_reduction <maximumf>, %40, %cst_22 [2] : vector<2x8x8xf32> to vector<2x8xf32>
    %42 = vector.shape_cast %41 : vector<2x8xf32> to vector<2x8x1xf32>
    %43 = vector.broadcast %42 : vector<2x8x1xf32> to vector<2x8x8xf32>
    %44 = arith.subf %40, %43 : vector<2x8x8xf32>
    %45 = math.exp %44 : vector<2x8x8xf32>
    %cst_23 = arith.constant dense<0.000000e+00> : vector<2x8xf32>
    %46 = vector.multi_reduction <add>, %45, %cst_23 [2] : vector<2x8x8xf32> to vector<2x8xf32>
    %47 = vector.shape_cast %46 : vector<2x8xf32> to vector<2x8x1xf32>
    "tpu.trace_start"() <{level = 10 : i32, message = "bqk,bkd->bqd"}> : () -> ()
    %cst_24 = arith.constant dense<0.000000e+00> : vector<2x8x8xf32>
    %48 = tpu.matmul %45, %39, %cst_24 {dimension_numbers = #tpu.dot_dimension_numbers<[2], [1], [1], [2], [0, 0, 0, 1, 1, 2], [0], [0]>} : vector<2x8x8xf32>, vector<2x8x8xf32>, vector<2x8x8xf32> -> vector<2x8x8xf32>
    "tpu.trace_stop"() : () -> ()
    %49 = tpu.reciprocal %47 {approx = true} : vector<2x8x1xf32> -> vector<2x8x1xf32>
    %50 = vector.broadcast %49 : vector<2x8x1xf32> to vector<2x8x8xf32>
    %51 = arith.mulf %48, %50 : vector<2x8x8xf32>
    %52 = vector.extract_strided_slice %19 {offsets = [0, 0, 16], sizes = [2, 8, 8], strides = [1, 1, 1]} : vector<2x8x32xf32> to vector<2x8x8xf32>
    %53 = vector.extract_strided_slice %20 {offsets = [0, 0, 16], sizes = [2, 8, 8], strides = [1, 1, 1]} : vector<2x8x32xf32> to vector<2x8x8xf32>
    %54 = vector.extract_strided_slice %21 {offsets = [0, 0, 16], sizes = [2, 8, 8], strides = [1, 1, 1]} : vector<2x8x32xf32> to vector<2x8x8xf32>
    "tpu.trace_start"() <{level = 10 : i32, message = "bqd,bkd->bqk"}> : () -> ()
    %cst_25 = arith.constant dense<0.000000e+00> : vector<2x8x8xf32>
    %55 = tpu.matmul %52, %53, %cst_25 {dimension_numbers = #tpu.dot_dimension_numbers<[2], [2], [1], [1], [0, 0, 0, 1, 1, 1], [0], [0]>} : vector<2x8x8xf32>, vector<2x8x8xf32>, vector<2x8x8xf32> -> vector<2x8x8xf32>
    "tpu.trace_stop"() : () -> ()
    %cst_26 = arith.constant dense<0xFF800000> : vector<2x8xf32>
    %56 = vector.multi_reduction <maximumf>, %55, %cst_26 [2] : vector<2x8x8xf32> to vector<2x8xf32>
    %57 = vector.shape_cast %56 : vector<2x8xf32> to vector<2x8x1xf32>
    %58 = vector.broadcast %57 : vector<2x8x1xf32> to vector<2x8x8xf32>
    %59 = arith.subf %55, %58 : vector<2x8x8xf32>
    %60 = math.exp %59 : vector<2x8x8xf32>
    %cst_27 = arith.constant dense<0.000000e+00> : vector<2x8xf32>
    %61 = vector.multi_reduction <add>, %60, %cst_27 [2] : vector<2x8x8xf32> to vector<2x8xf32>
    %62 = vector.shape_cast %61 : vector<2x8xf32> to vector<2x8x1xf32>
    "tpu.trace_start"() <{level = 10 : i32, message = "bqk,bkd->bqd"}> : () -> ()
    %cst_28 = arith.constant dense<0.000000e+00> : vector<2x8x8xf32>
    %63 = tpu.matmul %60, %54, %cst_28 {dimension_numbers = #tpu.dot_dimension_numbers<[2], [1], [1], [2], [0, 0, 0, 1, 1, 2], [0], [0]>} : vector<2x8x8xf32>, vector<2x8x8xf32>, vector<2x8x8xf32> -> vector<2x8x8xf32>
    "tpu.trace_stop"() : () -> ()
    %64 = tpu.reciprocal %62 {approx = true} : vector<2x8x1xf32> -> vector<2x8x1xf32>
    %65 = vector.broadcast %64 : vector<2x8x1xf32> to vector<2x8x8xf32>
    %66 = arith.mulf %63, %65 : vector<2x8x8xf32>
    %67 = vector.extract_strided_slice %19 {offsets = [0, 0, 24], sizes = [2, 8, 8], strides = [1, 1, 1]} : vector<2x8x32xf32> to vector<2x8x8xf32>
    %68 = vector.extract_strided_slice %20 {offsets = [0, 0, 24], sizes = [2, 8, 8], strides = [1, 1, 1]} : vector<2x8x32xf32> to vector<2x8x8xf32>
    %69 = vector.extract_strided_slice %21 {offsets = [0, 0, 24], sizes = [2, 8, 8], strides = [1, 1, 1]} : vector<2x8x32xf32> to vector<2x8x8xf32>
    "tpu.trace_start"() <{level = 10 : i32, message = "bqd,bkd->bqk"}> : () -> ()
    %cst_29 = arith.constant dense<0.000000e+00> : vector<2x8x8xf32>
    %70 = tpu.matmul %67, %68, %cst_29 {dimension_numbers = #tpu.dot_dimension_numbers<[2], [2], [1], [1], [0, 0, 0, 1, 1, 1], [0], [0]>} : vector<2x8x8xf32>, vector<2x8x8xf32>, vector<2x8x8xf32> -> vector<2x8x8xf32>
    "tpu.trace_stop"() : () -> ()
    %cst_30 = arith.constant dense<0xFF800000> : vector<2x8xf32>
    %71 = vector.multi_reduction <maximumf>, %70, %cst_30 [2] : vector<2x8x8xf32> to vector<2x8xf32>
    %72 = vector.shape_cast %71 : vector<2x8xf32> to vector<2x8x1xf32>
    %73 = vector.broadcast %72 : vector<2x8x1xf32> to vector<2x8x8xf32>
    %74 = arith.subf %70, %73 : vector<2x8x8xf32>
    %75 = math.exp %74 : vector<2x8x8xf32>
    %cst_31 = arith.constant dense<0.000000e+00> : vector<2x8xf32>
    %76 = vector.multi_reduction <add>, %75, %cst_31 [2] : vector<2x8x8xf32> to vector<2x8xf32>
    %77 = vector.shape_cast %76 : vector<2x8xf32> to vector<2x8x1xf32>
    "tpu.trace_start"() <{level = 10 : i32, message = "bqk,bkd->bqd"}> : () -> ()
    %cst_32 = arith.constant dense<0.000000e+00> : vector<2x8x8xf32>
    %78 = tpu.matmul %75, %69, %cst_32 {dimension_numbers = #tpu.dot_dimension_numbers<[2], [1], [1], [2], [0, 0, 0, 1, 1, 2], [0], [0]>} : vector<2x8x8xf32>, vector<2x8x8xf32>, vector<2x8x8xf32> -> vector<2x8x8xf32>
    "tpu.trace_stop"() : () -> ()
    %79 = tpu.reciprocal %77 {approx = true} : vector<2x8x1xf32> -> vector<2x8x1xf32>
    %80 = vector.broadcast %79 : vector<2x8x1xf32> to vector<2x8x8xf32>
    %81 = arith.mulf %78, %80 : vector<2x8x8xf32>
    %82 = tpu.concatenate %36, %51, %66, %81 in 2 : vector<2x8x8xf32>, vector<2x8x8xf32>, vector<2x8x8xf32>, vector<2x8x8xf32> -> vector<2x8x32xf32>
    %83 = vector.shape_cast %82 : vector<2x8x32xf32> to vector<16x32xf32>
    %c0_33 = arith.constant 0 : index
    %c0_34 = arith.constant 0 : index
    %84 = vector.load %arg5[%c0_33, %c0_34] : memref<32x32xf32, #tpu.memory_space<vmem>>, vector<32x32xf32>
    %cst_35 = arith.constant dense<0.000000e+00> : vector<16x32xf32>
    %85 = tpu.matmul %83, %84, %cst_35 {dimension_numbers = #tpu.dot_dimension_numbers<[1], [0], [0], [1], [0, 0, 1, 1], [], []>} : vector<16x32xf32>, vector<32x32xf32>, vector<16x32xf32> -> vector<16x32xf32>
    %c0_36 = arith.constant 0 : index
    %c0_37 = arith.constant 0 : index
    %86 = vector.load %arg9[%c0_36, %c0_37] : memref<1x32xf32, #tpu.memory_space<vmem>>, vector<1x32xf32>
    %87 = vector.broadcast %86 : vector<1x32xf32> to vector<16x32xf32>
    %88 = arith.addf %85, %87 : vector<16x32xf32>
    %89 = vector.shape_cast %88 : vector<16x32xf32> to vector<2x8x32xf32>
    %c0_38 = arith.constant 0 : index
    %c0_39 = arith.constant 0 : index
    %c0_40 = arith.constant 0 : index
    %90 = vector.load %arg10[%c0_38, %c0_39, %c0_40] : memref<2x8x32xf32, #tpu.memory_space<vmem>>, vector<2x8x32xf32>
    tpu.vector_store %arg10[%c0_38, %c0_39, %c0_40], %89 {strides = array<i32>} : memref<2x8x32xf32, #tpu.memory_space<vmem>>, vector<2x8x32xf32>,
    return
  }
  func.func @transform_0(%arg0: i32) -> (i32, i32, i32) {
    %c0_i32 = arith.constant 0 : i32
    %c0_i32_0 = arith.constant 0 : i32
    %c0_i32_1 = arith.constant 0 : i32
    return %arg0, %c0_i32, %c0_i32_0 : i32, i32, i32
  }
  func.func @transform_1(%arg0: i32) -> (i32, i32) {
    %c0_i32 = arith.constant 0 : i32
    %c0_i32_0 = arith.constant 0 : i32
    %c0_i32_1 = arith.constant 0 : i32
    return %c0_i32, %c0_i32_0 : i32, i32
  }
  func.func @transform_2(%arg0: i32) -> (i32, i32) {
    %c0_i32 = arith.constant 0 : i32
    %c0_i32_0 = arith.constant 0 : i32
    %c0_i32_1 = arith.constant 0 : i32
    return %c0_i32, %c0_i32_0 : i32, i32
  }
  func.func @transform_3(%arg0: i32) -> (i32, i32) {
    %c0_i32 = arith.constant 0 : i32
    %c0_i32_0 = arith.constant 0 : i32
    %c0_i32_1 = arith.constant 0 : i32
    return %c0_i32, %c0_i32_0 : i32, i32
  }
  func.func @transform_4(%arg0: i32) -> (i32, i32) {
    %c0_i32 = arith.constant 0 : i32
    %c0_i32_0 = arith.constant 0 : i32
    %c0_i32_1 = arith.constant 0 : i32
    return %c0_i32, %c0_i32_0 : i32, i32
  }
  func.func @transform_5(%arg0: i32) -> (i32, i32) {
    %c0_i32 = arith.constant 0 : i32
    %c0_i32_0 = arith.constant 0 : i32
    %c0_i32_1 = arith.constant 0 : i32
    return %c0_i32, %c0_i32_0 : i32, i32
  }
  func.func @transform_6(%arg0: i32) -> (i32, i32) {
    %c0_i32 = arith.constant 0 : i32
    %c0_i32_0 = arith.constant 0 : i32
    %c0_i32_1 = arith.constant 0 : i32
    return %c0_i32, %c0_i32_0 : i32, i32
  }
  func.func @transform_7(%arg0: i32) -> (i32, i32) {
    %c0_i32 = arith.constant 0 : i32
    %c0_i32_0 = arith.constant 0 : i32
    %c0_i32_1 = arith.constant 0 : i32
    return %c0_i32, %c0_i32_0 : i32, i32
  }
  func.func @transform_8(%arg0: i32) -> (i32, i32) {
    %c0_i32 = arith.constant 0 : i32
    %c0_i32_0 = arith.constant 0 : i32
    %c0_i32_1 = arith.constant 0 : i32
    return %c0_i32, %c0_i32_0 : i32, i32
  }
  func.func @transform_9(%arg0: i32) -> (i32, i32, i32) {
    %c0_i32 = arith.constant 0 : i32
    %c0_i32_0 = arith.constant 0 : i32
    %c0_i32_1 = arith.constant 0 : i32
    return %arg0, %c0_i32, %c0_i32_0 : i32, i32, i32
  }
}

</mosaic_0001>

<llo_original>
// kernel: tpu_custom_call.1
$region0: #{tpu_custom_call.1}
  #allocation0 [shape = 'u32[]', space=smem, size = 0x4, offset = 0x4, fixed_abs, tag = 'smem constant byte address 0x4 - core index']
  #allocation1 [shape = 'u32[72,128]{1,0:T(1,128)}', space=vmem, size = 0x9000, scoped, tag = 'internal scratch']
  %s0 = inlined_call_operand.hbm [shape: f32[2,8,32], index: 0, kind: input, shape index: {}]
  %s1 = inlined_call_operand.hbm [shape: f32[32,32], index: 1, kind: input, shape index: {}]
  %s2 = inlined_call_operand.hbm [shape: f32[32,32], index: 2, kind: input, shape index: {}]
  %s3 = inlined_call_operand.hbm [shape: f32[32,32], index: 3, kind: input, shape index: {}]
  %s4 = inlined_call_operand.hbm [shape: f32[32,32], index: 4, kind: input, shape index: {}]
  %s5 = inlined_call_operand.vmem [shape: f32[1,32], index: 5, kind: input, shape index: {}]
  %s6 = inlined_call_operand.vmem [shape: f32[1,32], index: 6, kind: input, shape index: {}]
  %s7 = inlined_call_operand.vmem [shape: f32[1,32], index: 7, kind: input, shape index: {}]
  %s8 = inlined_call_operand.vmem [shape: f32[1,32], index: 8, kind: input, shape index: {}]
  %s9 = inlined_call_operand.hbm [shape: f32[2,8,32], index: 9, kind: output, shape index: {}]
  %s10 = sld [smem:[#allocation0]]
  $region66: #{tpu_custom_call.1} parent=0
    _
  %s12 = ssub.s32 1, %s10
  %s13 = scalar_select 0, %s12, %s10
  $region1: #{tpu_custom_call.1} parent=0
    #allocation2 [shape = 'u8[8192]{0}', space=vmem, size = 0x2000, scoped, tag = 'input window, operand 0, single buffered']
    #allocation3 [shape = 's32[1]{0}', space=sflag, size = 0x4, scoped, tag = 'scoped memory for tpu_custom_call.1']
    #allocation4 [shape = 's32[1]{0}', space=sflag, size = 0x4, scoped, tag = 'scoped memory for tpu_custom_call.1']
    #allocation5 [shape = 'u8[16384]{0}', space=vmem, size = 0x4000, scoped, tag = 'input window, operand 1, single buffered']
    #allocation6 [shape = 's32[1]{0}', space=sflag, size = 0x4, scoped, tag = 'scoped memory for tpu_custom_call.1']
    #allocation7 [shape = 'u8[16384]{0}', space=vmem, size = 0x4000, scoped, tag = 'input window, operand 2, single buffered']
    #allocation8 [shape = 'u8[16384]{0}', space=vmem, size = 0x4000, scoped, tag = 'input window, operand 3, single buffered']
    #allocation9 [shape = 's32[1]{0}', space=sflag, size = 0x4, scoped, tag = 'scoped memory for tpu_custom_call.1']
    #allocation10 [shape = 'u8[16384]{0}', space=vmem, size = 0x4000, scoped, tag = 'input window, operand 4, single buffered']
    #allocation11 [shape = 'u8[8192]{0}', space=vmem, size = 0x2000, scoped, tag = 'output window, operand 0, single buffered']
    %14 = vsyncpa [#allocation3], 0
    %15 = vsyncpa [#allocation6], 0
    %16 = vsyncpa [#allocation9], 0
    %17 = vsyncpa [#allocation4], 0
    // Predicated region
    $region2: #{tpu_custom_call.1} parent=1 // pred_check
      _
    $region3: #{tpu_custom_call.1} parent=1 // pred_check_branch
      %19 = sbr.rel (0) target = $region5
    $region4: #{tpu_custom_call.1} parent=1 // pred_region
      %21 = vsyncadd [#allocation3], 0
      %s22 = sshll.u32 %s0, 4
      %s23 = int_to_ptr.hbm [resolvable:$true] %s22
      %s24 = sshll.u32 [#allocation2], 4
      %s25 = int_to_ptr.vmem [resolvable:$true] %s24
      %30 = dma.hbm_to_vmem [thread:$0]  %s23, 256, %s25, [#allocation3], 128, 128, 8
    $region5: #{tpu_custom_call.1} parent=1 // pred_fallthru
      _
    // Predicated region
    $region6: #{tpu_custom_call.1} parent=1 // pred_check
      _
    $region7: #{tpu_custom_call.1} parent=1 // pred_check_branch
      %32 = sbr.rel (0) target = $region9
    $region8: #{tpu_custom_call.1} parent=1 // pred_region
      %34 = vsyncadd [#allocation6], 0
      %s35 = sshll.u32 %s1, 4
      %s36 = int_to_ptr.hbm [resolvable:$true] %s35
      %s37 = sshll.u32 [#allocation5], 4
      %s38 = int_to_ptr.vmem [resolvable:$true] %s37
      %43 = dma.hbm_to_vmem [thread:$0]  %s36, 512, %s38, [#allocation6], 128, 128, 8
    $region9: #{tpu_custom_call.1} parent=1 // pred_fallthru
      _
    // Predicated region
    $region10: #{tpu_custom_call.1} parent=1 // pred_check
      _
    $region11: #{tpu_custom_call.1} parent=1 // pred_check_branch
      %45 = sbr.rel (0) target = $region13
    $region12: #{tpu_custom_call.1} parent=1 // pred_region
      %47 = vsyncadd [#allocation6], 0
      %s48 = sshll.u32 %s2, 4
      %s49 = int_to_ptr.hbm [resolvable:$true] %s48
      %s50 = sshll.u32 [#allocation7], 4
      %s51 = int_to_ptr.vmem [resolvable:$true] %s50
      %56 = dma.hbm_to_vmem [thread:$0]  %s49, 512, %s51, [#allocation6], 128, 128, 8
    $region13: #{tpu_custom_call.1} parent=1 // pred_fallthru
      _
    // Predicated region
    $region14: #{tpu_custom_call.1} parent=1 // pred_check
      _
    $region15: #{tpu_custom_call.1} parent=1 // pred_check_branch
      %58 = sbr.rel (0) target = $region17
    $region16: #{tpu_custom_call.1} parent=1 // pred_region
      %60 = vsyncadd [#allocation9], 0
      %s61 = sshll.u32 %s3, 4
      %s62 = int_to_ptr.hbm [resolvable:$true] %s61
      %s63 = sshll.u32 [#allocation8], 4
      %s64 = int_to_ptr.vmem [resolvable:$true] %s63
      %69 = dma.hbm_to_vmem [thread:$0]  %s62, 512, %s64, [#allocation9], 128, 128, 8
    $region17: #{tpu_custom_call.1} parent=1 // pred_fallthru
      _
    // Predicated region
    $region18: #{tpu_custom_call.1} parent=1 // pred_check
      _
    $region19: #{tpu_custom_call.1} parent=1 // pred_check_branch
      %71 = sbr.rel (0) target = $region21
    $region20: #{tpu_custom_call.1} parent=1 // pred_region
      %73 = vsyncadd [#allocation9], 0
      %s74 = sshll.u32 %s4, 4
      %s75 = int_to_ptr.hbm [resolvable:$true] %s74
      %s76 = sshll.u32 [#allocation10], 4
      %s77 = int_to_ptr.vmem [resolvable:$true] %s76
      %82 = dma.hbm_to_vmem [thread:$0]  %s75, 512, %s77, [#allocation9], 128, 128, 8
    $region21: #{tpu_custom_call.1} parent=1 // pred_fallthru
      _
    // Predicated region
    $region22: #{tpu_custom_call.1} parent=1 // pred_check
      _
    $region23: #{tpu_custom_call.1} parent=1 // pred_check_branch
      %84 = sbr.rel (0) target = $region25
    $region24: #{tpu_custom_call.1} parent=1 // pred_region
      _
    $region25: #{tpu_custom_call.1} parent=1 // pred_fallthru
      _
    // Predicated region
    $region26: #{tpu_custom_call.1} parent=1 // pred_check
      _
    $region27: #{tpu_custom_call.1} parent=1 // pred_check_branch
      %86 = sbr.rel (0) target = $region29
    $region28: #{tpu_custom_call.1} parent=1 // pred_region
      _
    $region29: #{tpu_custom_call.1} parent=1 // pred_fallthru
      _
    // Predicated region
    $region30: #{tpu_custom_call.1} parent=1 // pred_check
      _
    $region31: #{tpu_custom_call.1} parent=1 // pred_check_branch
      %88 = sbr.rel (0) target = $region33
    $region32: #{tpu_custom_call.1} parent=1 // pred_region
      _
    $region33: #{tpu_custom_call.1} parent=1 // pred_fallthru
      _
    // Predicated region
    $region34: #{tpu_custom_call.1} parent=1 // pred_check
      _
    $region35: #{tpu_custom_call.1} parent=1 // pred_check_branch
      %90 = sbr.rel (0) target = $region37
    $region36: #{tpu_custom_call.1} parent=1 // pred_region
      _
    $region37: #{tpu_custom_call.1} parent=1 // pred_fallthru
      _
    // Predicated region
    $region38: #{tpu_custom_call.1} parent=1 // pred_check
      _
    $region39: #{tpu_custom_call.1} parent=1 // pred_check_branch
      %92 = sbr.rel (0) target = $region41
    $region40: #{tpu_custom_call.1} parent=1 // pred_region
      %94 = dma.done [#allocation3], 256
    $region41: #{tpu_custom_call.1} parent=1 // pred_fallthru
      _
    // Predicated region
    $region42: #{tpu_custom_call.1} parent=1 // pred_check
      _
    $region43: #{tpu_custom_call.1} parent=1 // pred_check_branch
      %96 = sbr.rel (0) target = $region45
    $region44: #{tpu_custom_call.1} parent=1 // pred_region
      %98 = dma.done [#allocation6], 512
    $region45: #{tpu_custom_call.1} parent=1 // pred_fallthru
      _
    // Predicated region
    $region46: #{tpu_custom_call.1} parent=1 // pred_check
      _
    $region47: #{tpu_custom_call.1} parent=1 // pred_check_branch
      %100 = sbr.rel (0) target = $region49
    $region48: #{tpu_custom_call.1} parent=1 // pred_region
      %102 = dma.done [#allocation6], 512
    $region49: #{tpu_custom_call.1} parent=1 // pred_fallthru
      _
    // Predicated region
    $region50: #{tpu_custom_call.1} parent=1 // pred_check
      _
    $region51: #{tpu_custom_call.1} parent=1 // pred_check_branch
      %104 = sbr.rel (0) target = $region53
    $region52: #{tpu_custom_call.1} parent=1 // pred_region
      %106 = dma.done [#allocation9], 512
    $region53: #{tpu_custom_call.1} parent=1 // pred_fallthru
      _
    // Predicated region
    $region54: #{tpu_custom_call.1} parent=1 // pred_check
      _
    $region55: #{tpu_custom_call.1} parent=1 // pred_check_branch
      %108 = sbr.rel (0) target = $region57
    $region56: #{tpu_custom_call.1} parent=1 // pred_region
      %110 = dma.done [#allocation9], 512
    $region57: #{tpu_custom_call.1} parent=1 // pred_fallthru
      _
    %v111 = vld [vmem:[#allocation2] sm:$0xff]
    %v112 = vld [vmem:[#allocation2 + $0x8] sm:$0xff]
    %v113 = vld [vmem:[#allocation5] sm:$0xff]
    %v114 = vld [vmem:[#allocation5 + $0x8] sm:$0xff]
    %v115 = vld [vmem:[#allocation5 + $0x10] sm:$0xff]
    %v116 = vld [vmem:[#allocation5 + $0x18] sm:$0xff]
    %v117 = vld [vmem:[%s5] sm:$0x1]
    %v119 = vperm.slane %v117, 0
    %vm121 = vcmask 261120
    %v123 = vsel %vm121, %v111, 0
    %v126 = vsel %vm121, %v112, 0
    %128 = vmatpush.msra.mxu0 0.0
    %129 = vmatpush.msra.mxu0 0.0
    %130 = vmatpush.msra.mxu0 0.0
    %131 = vmatpush.msra.mxu0 0.0
    %132 = vmatpush.msra.mxu0 0.0
    %133 = vmatpush.msra.mxu0 0.0
    %134 = vmatpush.msra.mxu0 0.0
    %135 = vmatpush.msra.mxu0 0.0
    %136 = vmatpush.msra.mxu0 0.0
    %137 = vmatpush.msra.mxu0 0.0
    %138 = vmatpush.msra.mxu0 0.0
    %139 = vmatpush.msra.mxu0 0.0
    %140 = vmatpush.msra.mxu0 %v116
    %141 = vmatpush.msra.mxu0 %v115
    %142 = vmatpush.msra.mxu0 %v114
    %143 = vmatpush.msra.mxu0 %v113
    %144 = vmatmul.f32.gmra.mxu0 %v123
    %v145 = vpop.f32.mrf.mxu0
    %v146 = vadd.f32 %v119, %v145
    %147 = vmatmul.f32.gmra.mxu0 %v126
    %v148 = vpop.f32.mrf.mxu0
    %v149 = vadd.f32 %v119, %v148
    %150 = vdwg.mxu0
    %v151 = vmul.f32 %v146, 0.35355338
    %v152 = vmul.f32 %v149, 0.35355338
    %v153 = vld [vmem:[#allocation7] sm:$0xff]
    %v154 = vld [vmem:[#allocation7 + $0x8] sm:$0xff]
    %v155 = vld [vmem:[#allocation7 + $0x10] sm:$0xff]
    %v156 = vld [vmem:[#allocation7 + $0x18] sm:$0xff]
    %v157 = vld [vmem:[%s6] sm:$0x1]
    %v159 = vperm.slane %v157, 0
    %161 = vmatpush.msra.mxu0 0.0
    %162 = vmatpush.msra.mxu0 0.0
    %163 = vmatpush.msra.mxu0 0.0
    %164 = vmatpush.msra.mxu0 0.0
    %165 = vmatpush.msra.mxu0 0.0
    %166 = vmatpush.msra.mxu0 0.0
    %167 = vmatpush.msra.mxu0 0.0
    %168 = vmatpush.msra.mxu0 0.0
    %169 = vmatpush.msra.mxu0 0.0
    %170 = vmatpush.msra.mxu0 0.0
    %171 = vmatpush.msra.mxu0 0.0
    %172 = vmatpush.msra.mxu0 0.0
    %173 = vmatpush.msra.mxu0 %v156
    %174 = vmatpush.msra.mxu0 %v155
    %175 = vmatpush.msra.mxu0 %v154
    %176 = vmatpush.msra.mxu0 %v153
    %177 = vmatmul.f32.gmra.mxu0 %v123
    %v178 = vpop.f32.mrf.mxu0
    %v179 = vadd.f32 %v159, %v178
    %180 = vmatmul.f32.gmra.mxu0 %v126
    %v181 = vpop.f32.mrf.mxu0
    %v182 = vadd.f32 %v159, %v181
    %183 = vdwg.mxu0
    %v184 = vld [vmem:[#allocation8] sm:$0xff]
    %v185 = vld [vmem:[#allocation8 + $0x8] sm:$0xff]
    %v186 = vld [vmem:[#allocation8 + $0x10] sm:$0xff]
    %v187 = vld [vmem:[#allocation8 + $0x18] sm:$0xff]
    %v188 = vld [vmem:[%s7] sm:$0x1]
    %v190 = vperm.slane %v188, 0
    %192 = vmatpush.msra.mxu0 0.0
    %193 = vmatpush.msra.mxu0 0.0
    %194 = vmatpush.msra.mxu0 0.0
    %195 = vmatpush.msra.mxu0 0.0
    %196 = vmatpush.msra.mxu0 0.0
    %197 = vmatpush.msra.mxu0 0.0
    %198 = vmatpush.msra.mxu0 0.0
    %199 = vmatpush.msra.mxu0 0.0
    %200 = vmatpush.msra.mxu0 0.0
    %201 = vmatpush.msra.mxu0 0.0
    %202 = vmatpush.msra.mxu0 0.0
    %203 = vmatpush.msra.mxu0 0.0
    %204 = vmatpush.msra.mxu0 %v187
    %205 = vmatpush.msra.mxu0 %v186
    %206 = vmatpush.msra.mxu0 %v185
    %207 = vmatpush.msra.mxu0 %v184
    %208 = vmatmul.f32.gmra.mxu0 %v123
    %v209 = vpop.f32.mrf.mxu0
    %v210 = vadd.f32 %v190, %v209
    %211 = vmatmul.f32.gmra.mxu0 %v126
    %v212 = vpop.f32.mrf.mxu0
    %v213 = vadd.f32 %v190, %v212
    %214 = vdwg.mxu0
    %vm215 = vcmask 64512
    %v217 = vsel %vm215, %v151, 0
    %v220 = vsel %vm215, %v179, 0
    %222 = vmatpush.xpose.msra.mxu0 0.0
    %223 = vmatpush.xpose.msra.mxu0 0.0
    %224 = vmatpush.xpose.msra.mxu0 0.0
    %225 = vmatpush.xpose.msra.mxu0 0.0
    %226 = vmatpush.xpose.msra.mxu0 0.0
    %227 = vmatpush.xpose.msra.mxu0 0.0
    %228 = vmatpush.xpose.msra.mxu0 0.0
    %229 = vmatpush.xpose.msra.mxu0 0.0
    %230 = vmatpush.xpose.msra.mxu0 0.0
    %231 = vmatpush.xpose.msra.mxu0 0.0
    %232 = vmatpush.xpose.msra.mxu0 0.0
    %233 = vmatpush.xpose.msra.mxu0 0.0
    %234 = vmatpush.xpose.msra.mxu0 0.0
    %235 = vmatpush.xpose.msra.mxu0 0.0
    %236 = vmatpush.xpose.msra.mxu0 0.0
    %237 = vmatpush.xpose.msra.mxu0 %v220
    %238 = vmatmul.f32.gmra.mxu0 %v217
    %v239 = vpop.f32.mrf.mxu0
    %v240 = vadd.f32 0.0, %v239
    %241 = vdwg.mxu0
    %v243 = vsel %vm215, %v152, 0
    %v246 = vsel %vm215, %v182, 0
    %248 = vmatpush.xpose.msra.mxu0 0.0
    %249 = vmatpush.xpose.msra.mxu0 0.0
    %250 = vmatpush.xpose.msra.mxu0 0.0
    %251 = vmatpush.xpose.msra.mxu0 0.0
    %252 = vmatpush.xpose.msra.mxu0 0.0
    %253 = vmatpush.xpose.msra.mxu0 0.0
    %254 = vmatpush.xpose.msra.mxu0 0.0
    %255 = vmatpush.xpose.msra.mxu0 0.0
    %256 = vmatpush.xpose.msra.mxu0 0.0
    %257 = vmatpush.xpose.msra.mxu0 0.0
    %258 = vmatpush.xpose.msra.mxu0 0.0
    %259 = vmatpush.xpose.msra.mxu0 0.0
    %260 = vmatpush.xpose.msra.mxu0 0.0
    %261 = vmatpush.xpose.msra.mxu0 0.0
    %262 = vmatpush.xpose.msra.mxu0 0.0
    %263 = vmatpush.xpose.msra.mxu0 %v246
    %264 = vmatmul.f32.gmra.mxu0 %v243
    %v265 = vpop.f32.mrf.mxu0
    %v266 = vadd.f32 0.0, %v265
    %267 = vdwg.mxu0
    %v268 = vsel %vm215, %v240, -inf
    %269 = vmax.xlane.f32.xlu0 %v268
    %v270 = vpop.xlane.xlu0 %269
    %v271 = vsel %vm215, %v266, -inf
    %272 = vmax.xlane.f32.xlu0 %v271
    %v273 = vpop.xlane.xlu0 %272
    %v274 = vsub.f32 %v240, %v270
    %v275 = vsub.f32 %v266, %v273
    %v276 = vmul.f32 %v274, 1.442695
    %v277 = vpow.pop %v276
    %v278 = vmul.f32 %v275, 1.442695
    %v279 = vpow.pop %v278
    %v280 = vsel %vm215, %v277, 0.0
    %281 = vadd.xlane.f32.xlu0 %v280
    %v282 = vpop.xlane.xlu0 %281
    %v283 = vsel %vm215, %v279, 0.0
    %284 = vadd.xlane.f32.xlu0 %v283
    %v285 = vpop.xlane.xlu0 %284
    %v287 = vsel %vm215, %v277, 0
    %289 = vmatpush.msra.mxu0 0.0
    %290 = vmatpush.msra.mxu0 0.0
    %291 = vmatpush.msra.mxu0 0.0
    %292 = vmatpush.msra.mxu0 0.0
    %293 = vmatpush.msra.mxu0 0.0
    %294 = vmatpush.msra.mxu0 0.0
    %295 = vmatpush.msra.mxu0 0.0
    %296 = vmatpush.msra.mxu0 0.0
    %297 = vmatpush.msra.mxu0 0.0
    %298 = vmatpush.msra.mxu0 0.0
    %299 = vmatpush.msra.mxu0 0.0
    %300 = vmatpush.msra.mxu0 0.0
    %301 = vmatpush.msra.mxu0 0.0
    %302 = vmatpush.msra.mxu0 0.0
    %303 = vmatpush.msra.mxu0 0.0
    %304 = vmatpush.msra.mxu0 %v210
    %305 = vmatmul.f32.gmra.mxu0 %v287
    %v306 = vpop.f32.mrf.mxu0
    %v307 = vadd.f32 0.0, %v306
    %308 = vdwg.mxu0
    %v310 = vsel %vm215, %v279, 0
    %312 = vmatpush.msra.mxu0 0.0
    %313 = vmatpush.msra.mxu0 0.0
    %314 = vmatpush.msra.mxu0 0.0
    %315 = vmatpush.msra.mxu0 0.0
    %316 = vmatpush.msra.mxu0 0.0
    %317 = vmatpush.msra.mxu0 0.0
    %318 = vmatpush.msra.mxu0 0.0
    %319 = vmatpush.msra.mxu0 0.0
    %320 = vmatpush.msra.mxu0 0.0
    %321 = vmatpush.msra.mxu0 0.0
    %322 = vmatpush.msra.mxu0 0.0
    %323 = vmatpush.msra.mxu0 0.0
    %324 = vmatpush.msra.mxu0 0.0
    %325 = vmatpush.msra.mxu0 0.0
    %326 = vmatpush.msra.mxu0 0.0
    %327 = vmatpush.msra.mxu0 %v213
    %328 = vmatmul.f32.gmra.mxu0 %v310
    %v329 = vpop.f32.mrf.mxu0
    %v330 = vadd.f32 0.0, %v329
    %331 = vdwg.mxu0
    %v332 = vrcp.pop %v282
    %v333 = vrcp.pop %v285
    %v334 = vmul.f32 %v307, %v332
    %v335 = vmul.f32 %v330, %v333
    %336 = vrot.lane.b32.xlu0 %v151, 120
    %v337 = vpop.permute.xlu0 %336
    %338 = vrot.lane.b32.xlu0 %v179, 120
    %v339 = vpop.permute.xlu0 %338
    %v340 = vsel %vm215, %v337, 0
    %v342 = vsel %vm215, %v339, 0
    %344 = vmatpush.xpose.msra.mxu0 0.0
    %345 = vmatpush.xpose.msra.mxu0 0.0
    %346 = vmatpush.xpose.msra.mxu0 0.0
    %347 = vmatpush.xpose.msra.mxu0 0.0
    %348 = vmatpush.xpose.msra.mxu0 0.0
    %349 = vmatpush.xpose.msra.mxu0 0.0
    %350 = vmatpush.xpose.msra.mxu0 0.0
    %351 = vmatpush.xpose.msra.mxu0 0.0
    %352 = vmatpush.xpose.msra.mxu0 0.0
    %353 = vmatpush.xpose.msra.mxu0 0.0
    %354 = vmatpush.xpose.msra.mxu0 0.0
    %355 = vmatpush.xpose.msra.mxu0 0.0
    %356 = vmatpush.xpose.msra.mxu0 0.0
    %357 = vmatpush.xpose.msra.mxu0 0.0
    %358 = vmatpush.xpose.msra.mxu0 0.0
    %359 = vmatpush.xpose.msra.mxu0 %v342
    %360 = vmatmul.f32.gmra.mxu0 %v340
    %v361 = vpop.f32.mrf.mxu0
    %v362 = vadd.f32 0.0, %v361
    %363 = vdwg.mxu0
    %364 = vrot.lane.b32.xlu0 %v152, 120
    %v365 = vpop.permute.xlu0 %364
    %366 = vrot.lane.b32.xlu0 %v182, 120
    %v367 = vpop.permute.xlu0 %366
    %v368 = vsel %vm215, %v365, 0
    %v370 = vsel %vm215, %v367, 0
    %372 = vmatpush.xpose.msra.mxu0 0.0
    %373 = vmatpush.xpose.msra.mxu0 0.0
    %374 = vmatpush.xpose.msra.mxu0 0.0
    %375 = vmatpush.xpose.msra.mxu0 0.0
    %376 = vmatpush.xpose.msra.mxu0 0.0
    %377 = vmatpush.xpose.msra.mxu0 0.0
    %378 = vmatpush.xpose.msra.mxu0 0.0
    %379 = vmatpush.xpose.msra.mxu0 0.0
    %380 = vmatpush.xpose.msra.mxu0 0.0
    %381 = vmatpush.xpose.msra.mxu0 0.0
    %382 = vmatpush.xpose.msra.mxu0 0.0
    %383 = vmatpush.xpose.msra.mxu0 0.0
    %384 = vmatpush.xpose.msra.mxu0 0.0
    %385 = vmatpush.xpose.msra.mxu0 0.0
    %386 = vmatpush.xpose.msra.mxu0 0.0
    %387 = vmatpush.xpose.msra.mxu0 %v370
    %388 = vmatmul.f32.gmra.mxu0 %v368
    %v389 = vpop.f32.mrf.mxu0
    %v390 = vadd.f32 0.0, %v389
    %391 = vdwg.mxu0
    %v392 = vsel %vm215, %v362, -inf
    %393 = vmax.xlane.f32.xlu0 %v392
    %v394 = vpop.xlane.xlu0 %393
    %v395 = vsel %vm215, %v390, -inf
    %396 = vmax.xlane.f32.xlu0 %v395
    %v397 = vpop.xlane.xlu0 %396
    %v398 = vsub.f32 %v362, %v394
    %v399 = vsub.f32 %v390, %v397
    %v400 = vmul.f32 %v398, 1.442695
    %v401 = vpow.pop %v400
    %v402 = vmul.f32 %v399, 1.442695
    %v403 = vpow.pop %v402
    %v404 = vsel %vm215, %v401, 0.0
    %405 = vadd.xlane.f32.xlu0 %v404
    %v406 = vpop.xlane.xlu0 %405
    %v407 = vsel %vm215, %v403, 0.0
    %408 = vadd.xlane.f32.xlu0 %v407
    %v409 = vpop.xlane.xlu0 %408
    %411 = vrot.lane.b32.xlu0 %v210, 120
    %v412 = vpop.permute.xlu0 %411
    %v415 = vsel %vm215, %v401, 0
    %417 = vmatpush.msra.mxu0 0.0
    %418 = vmatpush.msra.mxu0 0.0
    %419 = vmatpush.msra.mxu0 0.0
    %420 = vmatpush.msra.mxu0 0.0
    %421 = vmatpush.msra.mxu0 0.0
    %422 = vmatpush.msra.mxu0 0.0
    %423 = vmatpush.msra.mxu0 0.0
    %424 = vmatpush.msra.mxu0 0.0
    %425 = vmatpush.msra.mxu0 0.0
    %426 = vmatpush.msra.mxu0 0.0
    %427 = vmatpush.msra.mxu0 0.0
    %428 = vmatpush.msra.mxu0 0.0
    %429 = vmatpush.msra.mxu0 0.0
    %430 = vmatpush.msra.mxu0 0.0
    %431 = vmatpush.msra.mxu0 0.0
    %432 = vmatpush.msra.mxu0 %v412
    %433 = vmatmul.f32.gmra.mxu0 %v415
    %v434 = vpop.f32.mrf.mxu0
    %v435 = vadd.f32 0.0, %v434
    %436 = vdwg.mxu0
    %438 = vrot.lane.b32.xlu0 %v213, 120
    %v439 = vpop.permute.xlu0 %438
    %v442 = vsel %vm215, %v403, 0
    %444 = vmatpush.msra.mxu0 0.0
    %445 = vmatpush.msra.mxu0 0.0
    %446 = vmatpush.msra.mxu0 0.0
    %447 = vmatpush.msra.mxu0 0.0
    %448 = vmatpush.msra.mxu0 0.0
    %449 = vmatpush.msra.mxu0 0.0
    %450 = vmatpush.msra.mxu0 0.0
    %451 = vmatpush.msra.mxu0 0.0
    %452 = vmatpush.msra.mxu0 0.0
    %453 = vmatpush.msra.mxu0 0.0
    %454 = vmatpush.msra.mxu0 0.0
    %455 = vmatpush.msra.mxu0 0.0
    %456 = vmatpush.msra.mxu0 0.0
    %457 = vmatpush.msra.mxu0 0.0
    %458 = vmatpush.msra.mxu0 0.0
    %459 = vmatpush.msra.mxu0 %v439
    %460 = vmatmul.f32.gmra.mxu0 %v442
    %v461 = vpop.f32.mrf.mxu0
    %v462 = vadd.f32 0.0, %v461
    %463 = vdwg.mxu0
    %v464 = vrcp.pop %v406
    %v465 = vrcp.pop %v409
    %v466 = vmul.f32 %v435, %v464
    %v467 = vmul.f32 %v462, %v465
    %468 = vrot.lane.b32.xlu0 %v151, 112
    %v469 = vpop.permute.xlu0 %468
    %470 = vrot.lane.b32.xlu0 %v179, 112
    %v471 = vpop.permute.xlu0 %470
    %v472 = vsel %vm215, %v469, 0
    %v474 = vsel %vm215, %v471, 0
    %476 = vmatpush.xpose.msra.mxu0 0.0
    %477 = vmatpush.xpose.msra.mxu0 0.0
    %478 = vmatpush.xpose.msra.mxu0 0.0
    %479 = vmatpush.xpose.msra.mxu0 0.0
    %480 = vmatpush.xpose.msra.mxu0 0.0
    %481 = vmatpush.xpose.msra.mxu0 0.0
    %482 = vmatpush.xpose.msra.mxu0 0.0
    %483 = vmatpush.xpose.msra.mxu0 0.0
    %484 = vmatpush.xpose.msra.mxu0 0.0
    %485 = vmatpush.xpose.msra.mxu0 0.0
    %486 = vmatpush.xpose.msra.mxu0 0.0
    %487 = vmatpush.xpose.msra.mxu0 0.0
    %488 = vmatpush.xpose.msra.mxu0 0.0
    %489 = vmatpush.xpose.msra.mxu0 0.0
    %490 = vmatpush.xpose.msra.mxu0 0.0
    %491 = vmatpush.xpose.msra.mxu0 %v474
    %492 = vmatmul.f32.gmra.mxu0 %v472
    %v493 = vpop.f32.mrf.mxu0
    %v494 = vadd.f32 0.0, %v493
    %495 = vdwg.mxu0
    %496 = vrot.lane.b32.xlu0 %v152, 112
    %v497 = vpop.permute.xlu0 %496
    %498 = vrot.lane.b32.xlu0 %v182, 112
    %v499 = vpop.permute.xlu0 %498
    %v500 = vsel %vm215, %v497, 0
    %v502 = vsel %vm215, %v499, 0
    %504 = vmatpush.xpose.msra.mxu0 0.0
    %505 = vmatpush.xpose.msra.mxu0 0.0
    %506 = vmatpush.xpose.msra.mxu0 0.0
    %507 = vmatpush.xpose.msra.mxu0 0.0
    %508 = vmatpush.xpose.msra.mxu0 0.0
    %509 = vmatpush.xpose.msra.mxu0 0.0
    %510 = vmatpush.xpose.msra.mxu0 0.0
    %511 = vmatpush.xpose.msra.mxu0 0.0
    %512 = vmatpush.xpose.msra.mxu0 0.0
    %513 = vmatpush.xpose.msra.mxu0 0.0
    %514 = vmatpush.xpose.msra.mxu0 0.0
    %515 = vmatpush.xpose.msra.mxu0 0.0
    %516 = vmatpush.xpose.msra.mxu0 0.0
    %517 = vmatpush.xpose.msra.mxu0 0.0
    %518 = vmatpush.xpose.msra.mxu0 0.0
    %519 = vmatpush.xpose.msra.mxu0 %v502
    %520 = vmatmul.f32.gmra.mxu0 %v500
    %v521 = vpop.f32.mrf.mxu0
    %v522 = vadd.f32 0.0, %v521
    %523 = vdwg.mxu0
    %v524 = vsel %vm215, %v494, -inf
    %525 = vmax.xlane.f32.xlu0 %v524
    %v526 = vpop.xlane.xlu0 %525
    %v527 = vsel %vm215, %v522, -inf
    %528 = vmax.xlane.f32.xlu0 %v527
    %v529 = vpop.xlane.xlu0 %528
    %v530 = vsub.f32 %v494, %v526
    %v531 = vsub.f32 %v522, %v529
    %v532 = vmul.f32 %v530, 1.442695
    %v533 = vpow.pop %v532
    %v534 = vmul.f32 %v531, 1.442695
    %v535 = vpow.pop %v534
    %v536 = vsel %vm215, %v533, 0.0
    %537 = vadd.xlane.f32.xlu0 %v536
    %v538 = vpop.xlane.xlu0 %537
    %v539 = vsel %vm215, %v535, 0.0
    %540 = vadd.xlane.f32.xlu0 %v539
    %v541 = vpop.xlane.xlu0 %540
    %542 = vrot.lane.b32.xlu0 %v210, 112
    %v543 = vpop.permute.xlu0 %542
    %v546 = vsel %vm215, %v533, 0
    %548 = vmatpush.msra.mxu0 0.0
    %549 = vmatpush.msra.mxu0 0.0
    %550 = vmatpush.msra.mxu0 0.0
    %551 = vmatpush.msra.mxu0 0.0
    %552 = vmatpush.msra.mxu0 0.0
    %553 = vmatpush.msra.mxu0 0.0
    %554 = vmatpush.msra.mxu0 0.0
    %555 = vmatpush.msra.mxu0 0.0
    %556 = vmatpush.msra.mxu0 0.0
    %557 = vmatpush.msra.mxu0 0.0
    %558 = vmatpush.msra.mxu0 0.0
    %559 = vmatpush.msra.mxu0 0.0
    %560 = vmatpush.msra.mxu0 0.0
    %561 = vmatpush.msra.mxu0 0.0
    %562 = vmatpush.msra.mxu0 0.0
    %563 = vmatpush.msra.mxu0 %v543
    %564 = vmatmul.f32.gmra.mxu0 %v546
    %v565 = vpop.f32.mrf.mxu0
    %v566 = vadd.f32 0.0, %v565
    %567 = vdwg.mxu0
    %568 = vrot.lane.b32.xlu0 %v213, 112
    %v569 = vpop.permute.xlu0 %568
    %v572 = vsel %vm215, %v535, 0
    %574 = vmatpush.msra.mxu0 0.0
    %575 = vmatpush.msra.mxu0 0.0
    %576 = vmatpush.msra.mxu0 0.0
    %577 = vmatpush.msra.mxu0 0.0
    %578 = vmatpush.msra.mxu0 0.0
    %579 = vmatpush.msra.mxu0 0.0
    %580 = vmatpush.msra.mxu0 0.0
    %581 = vmatpush.msra.mxu0 0.0
    %582 = vmatpush.msra.mxu0 0.0
    %583 = vmatpush.msra.mxu0 0.0
    %584 = vmatpush.msra.mxu0 0.0
    %585 = vmatpush.msra.mxu0 0.0
    %586 = vmatpush.msra.mxu0 0.0
    %587 = vmatpush.msra.mxu0 0.0
    %588 = vmatpush.msra.mxu0 0.0
    %589 = vmatpush.msra.mxu0 %v569
    %590 = vmatmul.f32.gmra.mxu0 %v572
    %v591 = vpop.f32.mrf.mxu0
    %v592 = vadd.f32 0.0, %v591
    %593 = vdwg.mxu0
    %v594 = vrcp.pop %v538
    %v595 = vrcp.pop %v541
    %v596 = vmul.f32 %v566, %v594
    %v597 = vmul.f32 %v592, %v595
    %598 = vrot.lane.b32.xlu0 %v151, 104
    %v599 = vpop.permute.xlu0 %598
    %600 = vrot.lane.b32.xlu0 %v179, 104
    %v601 = vpop.permute.xlu0 %600
    %v602 = vsel %vm215, %v599, 0
    %v604 = vsel %vm215, %v601, 0
    %606 = vmatpush.xpose.msra.mxu0 0.0
    %607 = vmatpush.xpose.msra.mxu0 0.0
    %608 = vmatpush.xpose.msra.mxu0 0.0
    %609 = vmatpush.xpose.msra.mxu0 0.0
    %610 = vmatpush.xpose.msra.mxu0 0.0
    %611 = vmatpush.xpose.msra.mxu0 0.0
    %612 = vmatpush.xpose.msra.mxu0 0.0
    %613 = vmatpush.xpose.msra.mxu0 0.0
    %614 = vmatpush.xpose.msra.mxu0 0.0
    %615 = vmatpush.xpose.msra.mxu0 0.0
    %616 = vmatpush.xpose.msra.mxu0 0.0
    %617 = vmatpush.xpose.msra.mxu0 0.0
    %618 = vmatpush.xpose.msra.mxu0 0.0
    %619 = vmatpush.xpose.msra.mxu0 0.0
    %620 = vmatpush.xpose.msra.mxu0 0.0
    %621 = vmatpush.xpose.msra.mxu0 %v604
    %622 = vmatmul.f32.gmra.mxu0 %v602
    %v623 = vpop.f32.mrf.mxu0
    %v624 = vadd.f32 0.0, %v623
    %625 = vdwg.mxu0
    %626 = vrot.lane.b32.xlu0 %v152, 104
    %v627 = vpop.permute.xlu0 %626
    %628 = vrot.lane.b32.xlu0 %v182, 104
    %v629 = vpop.permute.xlu0 %628
    %v630 = vsel %vm215, %v627, 0
    %v632 = vsel %vm215, %v629, 0
    %634 = vmatpush.xpose.msra.mxu0 0.0
    %635 = vmatpush.xpose.msra.mxu0 0.0
    %636 = vmatpush.xpose.msra.mxu0 0.0
    %637 = vmatpush.xpose.msra.mxu0 0.0
    %638 = vmatpush.xpose.msra.mxu0 0.0
    %639 = vmatpush.xpose.msra.mxu0 0.0
    %640 = vmatpush.xpose.msra.mxu0 0.0
    %641 = vmatpush.xpose.msra.mxu0 0.0
    %642 = vmatpush.xpose.msra.mxu0 0.0
    %643 = vmatpush.xpose.msra.mxu0 0.0
    %644 = vmatpush.xpose.msra.mxu0 0.0
    %645 = vmatpush.xpose.msra.mxu0 0.0
    %646 = vmatpush.xpose.msra.mxu0 0.0
    %647 = vmatpush.xpose.msra.mxu0 0.0
    %648 = vmatpush.xpose.msra.mxu0 0.0
    %649 = vmatpush.xpose.msra.mxu0 %v632
    %650 = vmatmul.f32.gmra.mxu0 %v630
    %v651 = vpop.f32.mrf.mxu0
    %v652 = vadd.f32 0.0, %v651
    %653 = vdwg.mxu0
    %v654 = vsel %vm215, %v624, -inf
    %655 = vmax.xlane.f32.xlu0 %v654
    %v656 = vpop.xlane.xlu0 %655
    %v657 = vsel %vm215, %v652, -inf
    %658 = vmax.xlane.f32.xlu0 %v657
    %v659 = vpop.xlane.xlu0 %658
    %v660 = vsub.f32 %v624, %v656
    %v661 = vsub.f32 %v652, %v659
    %v662 = vmul.f32 %v660, 1.442695
    %v663 = vpow.pop %v662
    %v664 = vmul.f32 %v661, 1.442695
    %v665 = vpow.pop %v664
    %v666 = vsel %vm215, %v663, 0.0
    %667 = vadd.xlane.f32.xlu0 %v666
    %v668 = vpop.xlane.xlu0 %667
    %v669 = vsel %vm215, %v665, 0.0
    %670 = vadd.xlane.f32.xlu0 %v669
    %v671 = vpop.xlane.xlu0 %670
    %672 = vrot.lane.b32.xlu0 %v210, 104
    %v673 = vpop.permute.xlu0 %672
    %v676 = vsel %vm215, %v663, 0
    %678 = vmatpush.msra.mxu0 0.0
    %679 = vmatpush.msra.mxu0 0.0
    %680 = vmatpush.msra.mxu0 0.0
    %681 = vmatpush.msra.mxu0 0.0
    %682 = vmatpush.msra.mxu0 0.0
    %683 = vmatpush.msra.mxu0 0.0
    %684 = vmatpush.msra.mxu0 0.0
    %685 = vmatpush.msra.mxu0 0.0
    %686 = vmatpush.msra.mxu0 0.0
    %687 = vmatpush.msra.mxu0 0.0
    %688 = vmatpush.msra.mxu0 0.0
    %689 = vmatpush.msra.mxu0 0.0
    %690 = vmatpush.msra.mxu0 0.0
    %691 = vmatpush.msra.mxu0 0.0
    %692 = vmatpush.msra.mxu0 0.0
    %693 = vmatpush.msra.mxu0 %v673
    %694 = vmatmul.f32.gmra.mxu0 %v676
    %v695 = vpop.f32.mrf.mxu0
    %v696 = vadd.f32 0.0, %v695
    %697 = vdwg.mxu0
    %698 = vrot.lane.b32.xlu0 %v213, 104
    %v699 = vpop.permute.xlu0 %698
    %v702 = vsel %vm215, %v665, 0
    %704 = vmatpush.msra.mxu0 0.0
    %705 = vmatpush.msra.mxu0 0.0
    %706 = vmatpush.msra.mxu0 0.0
    %707 = vmatpush.msra.mxu0 0.0
    %708 = vmatpush.msra.mxu0 0.0
    %709 = vmatpush.msra.mxu0 0.0
    %710 = vmatpush.msra.mxu0 0.0
    %711 = vmatpush.msra.mxu0 0.0
    %712 = vmatpush.msra.mxu0 0.0
    %713 = vmatpush.msra.mxu0 0.0
    %714 = vmatpush.msra.mxu0 0.0
    %715 = vmatpush.msra.mxu0 0.0
    %716 = vmatpush.msra.mxu0 0.0
    %717 = vmatpush.msra.mxu0 0.0
    %718 = vmatpush.msra.mxu0 0.0
    %719 = vmatpush.msra.mxu0 %v699
    %720 = vmatmul.f32.gmra.mxu0 %v702
    %v721 = vpop.f32.mrf.mxu0
    %v722 = vadd.f32 0.0, %v721
    %723 = vdwg.mxu0
    %v724 = vrcp.pop %v668
    %v725 = vrcp.pop %v671
    %v726 = vmul.f32 %v696, %v724
    %v727 = vmul.f32 %v722, %v725
    %730 = vrot.lane.b32.xlu0 %v466, 8
    %v731 = vpop.permute.xlu0 %730
    %732 = vrot.lane.b32.xlu0 %v467, 8
    %v733 = vpop.permute.xlu0 %732
    %738 = vrot.lane.b32.xlu0 %v596, 16
    %v739 = vpop.permute.xlu0 %738
    %740 = vrot.lane.b32.xlu0 %v597, 16
    %v741 = vpop.permute.xlu0 %740
    %746 = vrot.lane.b32.xlu0 %v726, 24
    %v747 = vpop.permute.xlu0 %746
    %748 = vrot.lane.b32.xlu0 %v727, 24
    %v749 = vpop.permute.xlu0 %748
    %v752 = vsel %vm215, %v334, %v731
    %v753 = vsel %vm215, %v335, %v733
    %vm754 = vcmask 130048
    %v755 = vsel %vm754, %v752, %v739
    %v756 = vsel %vm754, %v753, %v741
    %vm757 = vcmask 195584
    %v758 = vsel %vm757, %v755, %v747
    %v759 = vsel %vm757, %v756, %v749
    %v760 = vld [vmem:[#allocation10] sm:$0xff]
    %v761 = vld [vmem:[#allocation10 + $0x8] sm:$0xff]
    %v762 = vld [vmem:[#allocation10 + $0x10] sm:$0xff]
    %v763 = vld [vmem:[#allocation10 + $0x18] sm:$0xff]
    %v764 = vld [vmem:[%s8] sm:$0x1]
    %v766 = vperm.slane %v764, 0
    %v769 = vsel %vm121, %v758, 0
    %v772 = vsel %vm121, %v759, 0
    %774 = vmatpush.msra.mxu0 0.0
    %775 = vmatpush.msra.mxu0 0.0
    %776 = vmatpush.msra.mxu0 0.0
    %777 = vmatpush.msra.mxu0 0.0
    %778 = vmatpush.msra.mxu0 0.0
    %779 = vmatpush.msra.mxu0 0.0
    %780 = vmatpush.msra.mxu0 0.0
    %781 = vmatpush.msra.mxu0 0.0
    %782 = vmatpush.msra.mxu0 0.0
    %783 = vmatpush.msra.mxu0 0.0
    %784 = vmatpush.msra.mxu0 0.0
    %785 = vmatpush.msra.mxu0 0.0
    %786 = vmatpush.msra.mxu0 %v763
    %787 = vmatpush.msra.mxu0 %v762
    %788 = vmatpush.msra.mxu0 %v761
    %789 = vmatpush.msra.mxu0 %v760
    %790 = vmatmul.f32.gmra.mxu0 %v769
    %v791 = vpop.f32.mrf.mxu0
    %v792 = vadd.f32 %v766, %v791
    %793 = vmatmul.f32.gmra.mxu0 %v772
    %v794 = vpop.f32.mrf.mxu0
    %v795 = vadd.f32 %v766, %v794
    %796 = vdwg.mxu0
    %797 = vst.msk [vmem:[#allocation11] sm:$0xff] %vm121, %v792
    %798 = vst.msk [vmem:[#allocation11 + $0x8] sm:$0xff] %vm121, %v795
    // Predicated region
    $region58: #{tpu_custom_call.1} parent=1 // pred_check
      _
    $region59: #{tpu_custom_call.1} parent=1 // pred_check_branch
      %800 = sbr.rel (0) target = $region61
    $region60: #{tpu_custom_call.1} parent=1 // pred_region
      %802 = vsyncadd [#allocation4], 0
      %s803 = sshll.u32 [#allocation11], 4
      %s804 = int_to_ptr.vmem [resolvable:$true] %s803
      %s805 = sshll.u32 %s9, 4
      %s806 = int_to_ptr.hbm [resolvable:$true] %s805
      %811 = dma.vmem_to_hbm [thread:$0]  %s804, 256, %s806, [#allocation4], 128, 128, 8
    $region61: #{tpu_custom_call.1} parent=1 // pred_fallthru
      _
    // Predicated region
    $region62: #{tpu_custom_call.1} parent=1 // pred_check
      _
    $region63: #{tpu_custom_call.1} parent=1 // pred_check_branch
      %813 = sbr.rel (0) target = $region65
    $region64: #{tpu_custom_call.1} parent=1 // pred_region
      %815 = dma.done [#allocation4], 256
    $region65: #{tpu_custom_call.1} parent=1 // pred_fallthru
      _
    %816 = vsyncpa [#allocation3], 1
    %817 = vsyncpa [#allocation6], 1
    %818 = vsyncpa [#allocation9], 1
    %819 = vsyncpa [#allocation4], 1

</llo_original>
